<compile_context>
chip_gen: v7x
topology: tpu7x:2x2x1
jax: 0.10.0
libtpu: 0.0.40
codegen_flags: <defaults>
</compile_context>

<pallas_src>
import functools

import jax
import jax.numpy as jnp
from jax.experimental import pallas as pl
from jax.experimental.pallas import tpu as pltpu


def _round_up(x, m):
    return (x + m - 1) // m * m


def _vmem_cap_bytes():
    """Usable per-TensorCore VMEM (leave headroom for compiler scratch)."""
    phys = 64 * 1024 * 1024  # conservative fallback (v7x per-TC)
    try:
        phys = int(pltpu.get_tpu_info().vmem_capacity_bytes)
    except Exception:
        pass
    return int(phys * 0.8)


def _num_tensorcores():
    """Best-effort TensorCores-per-chip count (v7x = 2); default 1 if unknown."""
    try:
        info = pltpu.get_tpu_info()
        for attr in ("num_cores", "core_count", "num_tensorcores"):
            v = getattr(info, attr, None)
            if isinstance(v, int) and v > 0:
                return v
    except Exception:
        pass
    try:
        if "v7" in jax.devices()[0].device_kind.lower():
            return 2
    except Exception:
        pass
    return 1


def _pick_tm(batch, tm_max):
    """Largest M tile that minimizes batch padding (16-aligned for bf16 LHS)."""
    b16 = _round_up(batch, 16)
    if b16 <= tm_max:
        return b16  # single M tile, minimal padding
    best_key, best_t = None, 16
    for t in range(16, tm_max + 1, 16):
        pad = _round_up(batch, t) - batch
        mxu_bonus = 2 if t % 256 == 0 else (1 if t % 128 == 0 else 0)
        key = (pad, -mxu_bonus, -t)
        if best_key is None or key < best_key:
            best_key, best_t = key, t
    return best_t


def _pick_tn(n, tn_max, want_split):
    """Lane-dense N tile; minimal padding; optionally force >=2 tiles (megacore)."""
    n128 = _round_up(n, 128)
    best_key, best_t = None, 128
    for t in range(128, min(tn_max, n128) + 1, 128):
        np_ = _round_up(n128, t)
        pad = np_ - n128
        split_penalty = 1 if (want_split and np_ // t < 2) else 0
        key = (pad, split_penalty, -t)
        if best_key is None or key < best_key:
            best_key, best_t = key, t
    return best_t


def _vmem_budget(tm, tn, tk, out_bytes):
    """Accurate main-kernel VMEM footprint (double-buffered streams + scratch)."""
    return (2 * (2 * tm * tk * 2)        # x_bf + x2_bf tiles (bf16), 2 buffers
            + 2 * (2 * tk * tn * 2)      # mu + W2 tiles (bf16), 2 buffers
            + 2 * (tm * tn * 2)          # zeta tile (bf16), 2 buffers
            + 2 * (tm * tn * out_bytes)  # out tile, 2 buffers
            + 2 * (tm * tn * 4)          # gamma/delta f32 accumulators
            + tm * tn * 4)               # finalize temporary (f32 out)


# --------------------------------------------------------------------------
# Kernel 1: W2 = softplus(sigma)^2, stable, K-padding rows zeroed, bf16 out.
# --------------------------------------------------------------------------
def _softplus_sq_kernel(s_ref, o_ref, *, k_valid):
    s = s_ref[...]
    # stable softplus: max(s, 0) + log1p(exp(-|s|))  (no overflow for large s)
    sp = jnp.maximum(s, 0.0) + jnp.log1p(jnp.exp(-jnp.abs(s)))
    w2 = sp * sp
    # Zero the K-padding rows so delta never picks up spurious mass even if
    # the zero-padding of x ever changes.
    rows = (pl.program_id(0) * s_ref.shape[0]
            + jax.lax.broadcasted_iota(jnp.int32, s.shape, 0))
    o_ref[...] = jnp.where(rows < k_valid, w2, 0.0).astype(o_ref.dtype)


# --------------------------------------------------------------------------
# Kernel 2: one-shot LHS prep — x_bf16 and (x*x)_bf16 in a single read pass.
# (Hoists the square + both casts out of the replayed matmul hot loop.)
# --------------------------------------------------------------------------
def _x_prep_kernel(x_ref, xb_ref, x2b_ref):
    x = x_ref[...]
    xb_ref[...] = x.astype(jnp.bfloat16)
    x2b_ref[...] = (x * x).astype(jnp.bfloat16)   # square in f32, emit bf16


# --------------------------------------------------------------------------
# Kernel 3: tiled dual-matmul + reparameterization epilogue.
#   gamma_acc += x_bf @ mu ;  delta_acc += x2_bf @ W2
#   out = gamma + sqrt(delta) * zeta           (only on the last K step)
# --------------------------------------------------------------------------
def _lrpm_matmul_kernel(xb_ref, x2b_ref, mu_ref, w2_ref, zeta_ref, o_ref,
                        gamma_acc, delta_acc):
    k = pl.program_id(2)

    @pl.when(k == 0)
    def _init():
        gamma_acc[...] = jnp.zeros_like(gamma_acc)
        delta_acc[...] = jnp.zeros_like(delta_acc)

    gamma_acc[...] += jnp.dot(xb_ref[...], mu_ref[...],
                              preferred_element_type=jnp.float32)
    delta_acc[...] += jnp.dot(x2b_ref[...], w2_ref[...],
                              preferred_element_type=jnp.float32)

    @pl.when(k == pl.num_programs(2) - 1)
    def _finalize():
        zeta = zeta_ref[...].astype(jnp.float32)
        out = gamma_acc[...] + jnp.sqrt(delta_acc[...]) * zeta
        o_ref[...] = out.astype(o_ref.dtype)


@functools.partial(jax.jit,
                   static_argnames=("tm_max", "tn_max", "tk_max", "out_dtype"))
def lrpm_linear(x, mu, sigma, zeta, *, tm_max=512, tn_max=1024, tk_max=1024,
                out_dtype=jnp.float32):
    """x: (B, K), mu/sigma: (K, N), zeta: (B, N) -> (B, N)."""
    B, K = x.shape
    K2, N = mu.shape
    assert K2 == K and sigma.shape == (K, N) and zeta.shape == (B, N)

    out_bytes = jnp.dtype(out_dtype).itemsize
    vmem_cap = _vmem_cap_bytes()

    # ---- tile selection --------------------------------------------------
    tm = _pick_tm(B, tm_max)
    m_tiles0 = _round_up(B, tm) // tm
    # If this chip has 2 TensorCores and the parallel (i, j) grid would be
    # 1x1, split N so both cores get work.
    want_split = (_num_tensorcores() >= 2) and (m_tiles0 == 1)
    tn = _pick_tn(N, tn_max, want_split)
    tk_cap = max(128, (tk_max // 128) * 128)
    tk = min(tk_cap, _round_up(K, 128))

    # Shrink tk/tn until the accurately budgeted footprint fits in VMEM.
    while ((_vmem_budget(tm, tn, tk, out_bytes) * 5) // 4 > vmem_cap
           and (tk > 128 or tn > 128)):
        if tk >= tn and tk > 128:
            tk = max(128, _round_up(tk // 2, 128))
        else:
            tn = max(128, _round_up(tn // 2, 128))

    Bp = _round_up(B, tm)
    Kp = _round_up(K, tk)
    Np = _round_up(N, tn)
    m_tiles, n_tiles, k_tiles = Bp // tm, Np // tn, Kp // tk

    f32 = jnp.float32
    x_p = jnp.pad(x.astype(f32), ((0, Bp - B), (0, Kp - K)))
    mu_bf = jnp.pad(mu.astype(f32), ((0, Kp - K), (0, Np - N))).astype(jnp.bfloat16)
    sigma_p = jnp.pad(sigma.astype(f32), ((0, Kp - K), (0, Np - N)))
    zeta_bf = jnp.pad(zeta.astype(f32),
                      ((0, Bp - B), (0, Np - N))).astype(jnp.bfloat16)

    # ---- one-shot weight transform: W2 = softplus(sigma)^2 (bf16) ---------
    w2_bf = pl.pallas_call(
        functools.partial(_softplus_sq_kernel, k_valid=K),
        out_shape=jax.ShapeDtypeStruct((Kp, Np), jnp.bfloat16),
        grid_spec=pltpu.PrefetchScalarGridSpec(
            num_scalar_prefetch=0,
            grid=(Kp // tk, Np // tn),
            in_specs=[pl.BlockSpec((tk, tn), lambda r, c: (r, c))],
            out_specs=pl.BlockSpec((tk, tn), lambda r, c: (r, c)),
        ),
        compiler_params=pltpu.CompilerParams(
            dimension_semantics=("parallel", "parallel")),
    )(sigma_p)

    # ---- one-shot LHS prep: x_bf16 and (x*x)_bf16 -------------------------
    xb, x2b = pl.pallas_call(
        _x_prep_kernel,
        out_shape=(jax.ShapeDtypeStruct((Bp, Kp), jnp.bfloat16),
                   jax.ShapeDtypeStruct((Bp, Kp), jnp.bfloat16)),
        grid_spec=pltpu.PrefetchScalarGridSpec(
            num_scalar_prefetch=0,
            grid=(Bp // tm, Kp // tk),
            in_specs=[pl.BlockSpec((tm, tk), lambda i, k: (i, k))],
            out_specs=[pl.BlockSpec((tm, tk), lambda i, k: (i, k)),
                       pl.BlockSpec((tm, tk), lambda i, k: (i, k))],
        ),
        compiler_params=pltpu.CompilerParams(
            dimension_semantics=("parallel", "parallel")),
    )(x_p)

    # ---- main kernel -------------------------------------------------------
    vmem_limit = int(min(vmem_cap,
                         max(32 * 1024 * 1024,
                             (_vmem_budget(tm, tn, tk, out_bytes) * 5) // 4)))

    cost = pl.CostEstimate(
        flops=4 * Bp * Kp * Np,                      # two matmuls, 2*M*K*N each
        transcendentals=Bp * Np,                     # sqrt in the epilogue
        bytes_accessed=int(n_tiles * (xb.size + x2b.size) * 2      # LHS re-streams
                           + m_tiles * (mu_bf.size + w2_bf.size) * 2  # weight re-streams
                           + zeta_bf.size * 2
                           + Bp * Np * out_bytes),
    )

    out_p = pl.pallas_call(
        _lrpm_matmul_kernel,
        out_shape=jax.ShapeDtypeStruct((Bp, Np), out_dtype),
        grid_spec=pltpu.PrefetchScalarGridSpec(
            num_scalar_prefetch=0,
            grid=(m_tiles, n_tiles, k_tiles),                 # K (reduction) last
            in_specs=[
                pl.BlockSpec((tm, tk), lambda i, j, k: (i, k)),   # x    (bf16)
                pl.BlockSpec((tm, tk), lambda i, j, k: (i, k)),   # x^2  (bf16)
                pl.BlockSpec((tk, tn), lambda i, j, k: (k, j)),   # mu   (bf16)
                pl.BlockSpec((tk, tn), lambda i, j, k: (k, j)),   # W2   (bf16)
                pl.BlockSpec((tm, tn), lambda i, j, k: (i, j)),   # zeta (bf16)
            ],
            out_specs=pl.BlockSpec((tm, tn), lambda i, j, k: (i, j)),
            scratch_shapes=[
                pltpu.VMEM((tm, tn), jnp.float32),   # gamma accumulator
                pltpu.VMEM((tm, tn), jnp.float32),   # delta accumulator
            ],
        ),
        compiler_params=pltpu.CompilerParams(
            dimension_semantics=("parallel", "parallel", "arbitrary"),
            vmem_limit_bytes=vmem_limit,
        ),
        cost_estimate=cost,
    )(xb, x2b, mu_bf, w2_bf, zeta_bf)

    return out_p[:B, :N]


# --------------------------------------------------------------------------
# References for checking.
# --------------------------------------------------------------------------
def _ref_f32(x, mu, sigma, zeta):
    gamma = x @ mu
    delta = (x * x) @ (jax.nn.softplus(sigma) ** 2)
    return gamma + jnp.sqrt(delta) * zeta


def _ref_bf16_mxu(x, mu, sigma, zeta):
    """Emulates the kernel's bf16-operand / f32-accumulate math."""
    x_bf = x.astype(jnp.bfloat16)
    x2_bf = (x * x).astype(jnp.bfloat16)
    mu_bf = mu.astype(jnp.bfloat16)
    w2_bf = (jax.nn.softplus(sigma) ** 2).astype(jnp.bfloat16)
    zeta_bf = zeta.astype(jnp.bfloat16).astype(jnp.float32)
    gamma = jnp.dot(x_bf, mu_bf, preferred_element_type=jnp.float32)
    delta = jnp.dot(x2_bf, w2_bf, preferred_element_type=jnp.float32)
    return gamma + jnp.sqrt(delta) * zeta_bf


if __name__ == "__main__":
    key = jax.random.PRNGKey(0)

    def run_and_check(B, IN_F, OUT_F, out_dtype=jnp.float32, **tile_kwargs):
        kx, kz, km, ks = jax.random.split(
            jax.random.fold_in(key, 131 * B + IN_F + 7 * OUT_F), 4)
        x = jax.random.normal(kx, (B, IN_F), dtype=jnp.float32)
        zeta = jax.random.normal(kz, (B, OUT_F), dtype=jnp.float32)
        mu = jax.random.normal(km, (IN_F, OUT_F), dtype=jnp.float32)
        sigma = jax.random.normal(ks, (IN_F, OUT_F), dtype=jnp.float32)

        out = lrpm_linear(x, mu, sigma, zeta, out_dtype=out_dtype, **tile_kwargs)
        out = jax.block_until_ready(out)
        assert out.shape == (B, OUT_F) and out.dtype == jnp.dtype(out_dtype)
        out_f32 = out.astype(jnp.float32)

        # Tight check vs a reference using the same bf16-MXU math.
        ref_bf = _ref_bf16_mxu(x, mu, sigma, zeta)
        if out_dtype == jnp.float32:
            assert jnp.allclose(out_f32, ref_bf, rtol=1e-2, atol=1e-1), \
                "mismatch vs bf16-MXU reference"
        else:
            assert jnp.allclose(out_f32, ref_bf, rtol=2e-2, atol=2e-1), \
                "mismatch vs bf16-MXU reference (bf16 output)"

        # Scale-robust check vs full-f32 math (bf16 operand rounding only).
        ref32 = _ref_f32(x, mu, sigma, zeta)
        rel = jnp.max(jnp.abs(out_f32 - ref32)) / (jnp.max(jnp.abs(ref32)) + 1e-6)
        assert float(rel) < 5e-2, "mismatch vs f32 reference"

    # Config 1: module-default-like tiny shape -> padding path (K 32->128,
    # N 64->128), single-tile grid.
    run_and_check(8, 32, 64)

    # Config 2: forced 128-wide tiles -> multi-tile N + K-accumulation path,
    # grid = (1, 3, 2).
    run_and_check(8, 256, 384, tn_max=128, tk_max=128)

    # Config 3: awkward batch (200 -> tm=208) with default large tiles; also
    # exercises the megacore N-split heuristic when 2 TCs are detected.
    run_and_check(200, 512, 512)

    # Config 4: bf16 output path (halved writeback traffic).
    run_and_check(16, 128, 256, out_dtype=jnp.bfloat16)

    print("KERNEL_OK")
</pallas_src>

<mosaic_0001>
module attributes {stable_mosaic.version = 11 : i64} {
  func.func @_softplus_sq_kernel(%arg0: i32, %arg1: i32, %arg2: memref<128x128xf32, #tpu.memory_space<vmem>>, %arg3: memref<128x128xbf16, #tpu.memory_space<vmem>>) attributes {dimension_semantics = [#tpu.dimension_semantics<parallel>, #tpu.dimension_semantics<parallel>], iteration_bounds = array<i64: 1, 1>, scalar_prefetch = 0 : i64, scratch_operands = 0 : i64, tpu.core_type = #tpu.core_type<tc>, window_params = [{transform_indices = @transform_0, window_bounds = array<i64: 128, 128>}, {transform_indices = @transform_1, window_bounds = array<i64: 128, 128>}]} {
    %c0 = arith.constant 0 : index
    %c0_0 = arith.constant 0 : index
    %0 = vector.load %arg2[%c0, %c0_0] : memref<128x128xf32, #tpu.memory_space<vmem>>, vector<128x128xf32>
    %cst = arith.constant 0.000000e+00 : f32
    %1 = vector.broadcast %cst : f32 to vector<128x128xf32>
    %2 = arith.maximumf %0, %1 : vector<128x128xf32>
    %3 = math.absf %0 : vector<128x128xf32>
    %cst_1 = arith.constant 0.000000e+00 : f32
    %4 = vector.broadcast %cst_1 : f32 to vector<128x128xf32>
    %5 = arith.subf %4, %3 : vector<128x128xf32>
    %6 = math.exp %5 : vector<128x128xf32>
    %7 = math.log1p %6 : vector<128x128xf32>
    %8 = arith.addf %2, %7 : vector<128x128xf32>
    %9 = arith.mulf %8, %8 : vector<128x128xf32>
    %c128_i32 = arith.constant 128 : i32
    %10 = arith.muli %arg0, %c128_i32 : i32
    %11 = tpu.iota {dimensions = array<i32: 0>} : vector<128x128xi32>
    %12 = vector.broadcast %10 : i32 to vector<128x128xi32>
    %13 = arith.addi %12, %11 : vector<128x128xi32>
    %c32_i32 = arith.constant 32 : i32
    %14 = vector.broadcast %c32_i32 : i32 to vector<128x128xi32>
    %15 = arith.cmpi slt, %13, %14 : vector<128x128xi32>
    %cst_2 = arith.constant 0.000000e+00 : f32
    %16 = vector.broadcast %cst_2 : f32 to vector<128x128xf32>
    %17 = arith.select %15, %9, %16 : vector<128x128xi1>, vector<128x128xf32>
    %18 = arith.truncf %17 : vector<128x128xf32> to vector<128x128xbf16>
    %c0_3 = arith.constant 0 : index
    %c0_4 = arith.constant 0 : index
    %19 = vector.load %arg3[%c0_3, %c0_4] : memref<128x128xbf16, #tpu.memory_space<vmem>>, vector<128x128xbf16>
    tpu.vector_store %arg3[%c0_3, %c0_4], %18 {strides = array<i32>} : memref<128x128xbf16, #tpu.memory_space<vmem>>, vector<128x128xbf16>,
    return
  }
  func.func @transform_0(%arg0: i32, %arg1: i32) -> (i32, i32) {
    %c0_i32 = arith.constant 0 : i32
    return %arg0, %arg1 : i32, i32
  }
  func.func @transform_1(%arg0: i32, %arg1: i32) -> (i32, i32) {
    %c0_i32 = arith.constant 0 : i32
    return %arg0, %arg1 : i32, i32
  }
}

module attributes {stable_mosaic.version = 11 : i64} {
  func.func @_x_prep_kernel(%arg0: i32, %arg1: i32, %arg2: memref<16x128xf32, #tpu.memory_space<vmem>>, %arg3: memref<16x128xbf16, #tpu.memory_space<vmem>>, %arg4: memref<16x128xbf16, #tpu.memory_space<vmem>>) attributes {dimension_semantics = [#tpu.dimension_semantics<parallel>, #tpu.dimension_semantics<parallel>], iteration_bounds = array<i64: 1, 1>, scalar_prefetch = 0 : i64, scratch_operands = 0 : i64, tpu.core_type = #tpu.core_type<tc>, window_params = [{transform_indices = @transform_0, window_bounds = array<i64: 16, 128>}, {transform_indices = @transform_1, window_bounds = array<i64: 16, 128>}, {transform_indices = @transform_2, window_bounds = array<i64: 16, 128>}]} {
    %c0 = arith.constant 0 : index
    %c0_0 = arith.constant 0 : index
    %0 = vector.load %arg2[%c0, %c0_0] : memref<16x128xf32, #tpu.memory_space<vmem>>, vector<16x128xf32>
    %1 = arith.truncf %0 : vector<16x128xf32> to vector<16x128xbf16>
    %c0_1 = arith.constant 0 : index
    %c0_2 = arith.constant 0 : index
    %2 = vector.load %arg3[%c0_1, %c0_2] : memref<16x128xbf16, #tpu.memory_space<vmem>>, vector<16x128xbf16>
    tpu.vector_store %arg3[%c0_1, %c0_2], %1 {strides = array<i32>} : memref<16x128xbf16, #tpu.memory_space<vmem>>, vector<16x128xbf16>,
    %3 = arith.mulf %0, %0 : vector<16x128xf32>
    %4 = arith.truncf %3 : vector<16x128xf32> to vector<16x128xbf16>
    %c0_3 = arith.constant 0 : index
    %c0_4 = arith.constant 0 : index
    %5 = vector.load %arg4[%c0_3, %c0_4] : memref<16x128xbf16, #tpu.memory_space<vmem>>, vector<16x128xbf16>
    tpu.vector_store %arg4[%c0_3, %c0_4], %4 {strides = array<i32>} : memref<16x128xbf16, #tpu.memory_space<vmem>>, vector<16x128xbf16>,
    return
  }
  func.func @transform_0(%arg0: i32, %arg1: i32) -> (i32, i32) {
    %c0_i32 = arith.constant 0 : i32
    return %arg0, %arg1 : i32, i32
  }
  func.func @transform_1(%arg0: i32, %arg1: i32) -> (i32, i32) {
    %c0_i32 = arith.constant 0 : i32
    return %arg0, %arg1 : i32, i32
  }
  func.func @transform_2(%arg0: i32, %arg1: i32) -> (i32, i32) {
    %c0_i32 = arith.constant 0 : i32
    return %arg0, %arg1 : i32, i32
  }
}

module attributes {stable_mosaic.version = 11 : i64} {
  func.func @_lrpm_matmul_kernel(%arg0: i32, %arg1: i32, %arg2: i32, %arg3: memref<16x128xbf16, #tpu.memory_space<vmem>>, %arg4: memref<16x128xbf16, #tpu.memory_space<vmem>>, %arg5: memref<128x128xbf16, #tpu.memory_space<vmem>>, %arg6: memref<128x128xbf16, #tpu.memory_space<vmem>>, %arg7: memref<16x128xbf16, #tpu.memory_space<vmem>>, %arg8: memref<16x128xf32, #tpu.memory_space<vmem>>, %arg9: memref<16x128xf32, #tpu.memory_space<vmem>>, %arg10: memref<16x128xf32, #tpu.memory_space<vmem>>) attributes {dimension_semantics = [#tpu.dimension_semantics<parallel>, #tpu.dimension_semantics<parallel>, #tpu.dimension_semantics<arbitrary>], iteration_bounds = array<i64: 1, 1, 1>, scalar_prefetch = 0 : i64, scratch_operands = 2 : i64, tpu.core_type = #tpu.core_type<tc>, window_params = [{transform_indices = @transform_0, window_bounds = array<i64: 16, 128>}, {transform_indices = @transform_1, window_bounds = array<i64: 16, 128>}, {transform_indices = @transform_2, window_bounds = array<i64: 128, 128>}, {transform_indices = @transform_3, window_bounds = array<i64: 128, 128>}, {transform_indices = @transform_4, window_bounds = array<i64: 16, 128>}, {transform_indices = @transform_5, window_bounds = array<i64: 16, 128>}]} {
    %c0_i32 = arith.constant 0 : i32
    %0 = arith.cmpi eq, %arg2, %c0_i32 : i32
    %1 = arith.extui %0 : i1 to i32
    %c0_i32_0 = arith.constant 0 : i32
    %2 = arith.cmpi ne, %1, %c0_i32_0 : i32
    scf.if %2 {
      %cst_19 = arith.constant 0.000000e+00 : f32
      %18 = vector.broadcast %cst_19 : f32 to vector<16x128xf32>
      %c0_20 = arith.constant 0 : index
      %c0_21 = arith.constant 0 : index
      %19 = vector.load %arg9[%c0_20, %c0_21] : memref<16x128xf32, #tpu.memory_space<vmem>>, vector<16x128xf32>
      tpu.vector_store %arg9[%c0_20, %c0_21], %18 {strides = array<i32>} : memref<16x128xf32, #tpu.memory_space<vmem>>, vector<16x128xf32>,
      %cst_22 = arith.constant 0.000000e+00 : f32
      %20 = vector.broadcast %cst_22 : f32 to vector<16x128xf32>
      %c0_23 = arith.constant 0 : index
      %c0_24 = arith.constant 0 : index
      %21 = vector.load %arg10[%c0_23, %c0_24] : memref<16x128xf32, #tpu.memory_space<vmem>>, vector<16x128xf32>
      tpu.vector_store %arg10[%c0_23, %c0_24], %20 {strides = array<i32>} : memref<16x128xf32, #tpu.memory_space<vmem>>, vector<16x128xf32>,
    } else {
    }
    %c0 = arith.constant 0 : index
    %c0_1 = arith.constant 0 : index
    %3 = vector.load %arg9[%c0, %c0_1] : memref<16x128xf32, #tpu.memory_space<vmem>>, vector<16x128xf32>
    %c0_2 = arith.constant 0 : index
    %c0_3 = arith.constant 0 : index
    %4 = vector.load %arg3[%c0_2, %c0_3] : memref<16x128xbf16, #tpu.memory_space<vmem>>, vector<16x128xbf16>
    %c0_4 = arith.constant 0 : index
    %c0_5 = arith.constant 0 : index
    %5 = vector.load %arg5[%c0_4, %c0_5] : memref<128x128xbf16, #tpu.memory_space<vmem>>, vector<128x128xbf16>
    %cst = arith.constant dense<0.000000e+00> : vector<16x128xf32>
    %6 = tpu.matmul %4, %5, %cst {dimension_numbers = #tpu.dot_dimension_numbers<[1], [0], [0], [1], [0, 0, 1, 1], [], []>} : vector<16x128xbf16>, vector<128x128xbf16>, vector<16x128xf32> -> vector<16x128xf32>
    %7 = arith.addf %3, %6 : vector<16x128xf32>
    %c0_6 = arith.constant 0 : index
    %c0_7 = arith.constant 0 : index
    %8 = vector.load %arg9[%c0_6, %c0_7] : memref<16x128xf32, #tpu.memory_space<vmem>>, vector<16x128xf32>
    tpu.vector_store %arg9[%c0_6, %c0_7], %7 {strides = array<i32>} : memref<16x128xf32, #tpu.memory_space<vmem>>, vector<16x128xf32>,
    %c0_8 = arith.constant 0 : index
    %c0_9 = arith.constant 0 : index
    %9 = vector.load %arg10[%c0_8, %c0_9] : memref<16x128xf32, #tpu.memory_space<vmem>>, vector<16x128xf32>
    %c0_10 = arith.constant 0 : index
    %c0_11 = arith.constant 0 : index
    %10 = vector.load %arg4[%c0_10, %c0_11] : memref<16x128xbf16, #tpu.memory_space<vmem>>, vector<16x128xbf16>
    %c0_12 = arith.constant 0 : index
    %c0_13 = arith.constant 0 : index
    %11 = vector.load %arg6[%c0_12, %c0_13] : memref<128x128xbf16, #tpu.memory_space<vmem>>, vector<128x128xbf16>
    %cst_14 = arith.constant dense<0.000000e+00> : vector<16x128xf32>
    %12 = tpu.matmul %10, %11, %cst_14 {dimension_numbers = #tpu.dot_dimension_numbers<[1], [0], [0], [1], [0, 0, 1, 1], [], []>} : vector<16x128xbf16>, vector<128x128xbf16>, vector<16x128xf32> -> vector<16x128xf32>
    %13 = arith.addf %9, %12 : vector<16x128xf32>
    %c0_15 = arith.constant 0 : index
    %c0_16 = arith.constant 0 : index
    %14 = vector.load %arg10[%c0_15, %c0_16] : memref<16x128xf32, #tpu.memory_space<vmem>>, vector<16x128xf32>
    tpu.vector_store %arg10[%c0_15, %c0_16], %13 {strides = array<i32>} : memref<16x128xf32, #tpu.memory_space<vmem>>, vector<16x128xf32>,
    %c0_i32_17 = arith.constant 0 : i32
    %15 = arith.cmpi eq, %arg2, %c0_i32_17 : i32
    %16 = arith.extui %15 : i1 to i32
    %c0_i32_18 = arith.constant 0 : i32
    %17 = arith.cmpi ne, %16, %c0_i32_18 : i32
    scf.if %17 {
      %c0_19 = arith.constant 0 : index
      %c0_20 = arith.constant 0 : index
      %18 = vector.load %arg7[%c0_19, %c0_20] : memref<16x128xbf16, #tpu.memory_space<vmem>>, vector<16x128xbf16>
      %19 = arith.extf %18 : vector<16x128xbf16> to vector<16x128xf32>
      %c0_21 = arith.constant 0 : index
      %c0_22 = arith.constant 0 : index
      %20 = vector.load %arg9[%c0_21, %c0_22] : memref<16x128xf32, #tpu.memory_space<vmem>>, vector<16x128xf32>
      %c0_23 = arith.constant 0 : index
      %c0_24 = arith.constant 0 : index
      %21 = vector.load %arg10[%c0_23, %c0_24] : memref<16x128xf32, #tpu.memory_space<vmem>>, vector<16x128xf32>
      %22 = math.sqrt %21 : vector<16x128xf32>
      %23 = arith.mulf %22, %19 : vector<16x128xf32>
      %24 = arith.addf %20, %23 : vector<16x128xf32>
      %c0_25 = arith.constant 0 : index
      %c0_26 = arith.constant 0 : index
      %25 = vector.load %arg8[%c0_25, %c0_26] : memref<16x128xf32, #tpu.memory_space<vmem>>, vector<16x128xf32>
      tpu.vector_store %arg8[%c0_25, %c0_26], %24 {strides = array<i32>} : memref<16x128xf32, #tpu.memory_space<vmem>>, vector<16x128xf32>,
    } else {
    }
    return
  }
  func.func @transform_0(%arg0: i32, %arg1: i32, %arg2: i32) -> (i32, i32) {
    %c0_i32 = arith.constant 0 : i32
    return %arg0, %arg2 : i32, i32
  }
  func.func @transform_1(%arg0: i32, %arg1: i32, %arg2: i32) -> (i32, i32) {
    %c0_i32 = arith.constant 0 : i32
    return %arg0, %arg2 : i32, i32
  }
  func.func @transform_2(%arg0: i32, %arg1: i32, %arg2: i32) -> (i32, i32) {
    %c0_i32 = arith.constant 0 : i32
    return %arg2, %arg1 : i32, i32
  }
  func.func @transform_3(%arg0: i32, %arg1: i32, %arg2: i32) -> (i32, i32) {
    %c0_i32 = arith.constant 0 : i32
    return %arg2, %arg1 : i32, i32
  }
  func.func @transform_4(%arg0: i32, %arg1: i32, %arg2: i32) -> (i32, i32) {
    %c0_i32 = arith.constant 0 : i32
    return %arg0, %arg1 : i32, i32
  }
  func.func @transform_5(%arg0: i32, %arg1: i32, %arg2: i32) -> (i32, i32) {
    %c0_i32 = arith.constant 0 : i32
    return %arg0, %arg1 : i32, i32
  }
}

</mosaic_0001>

<llo_original>
// kernel: lrpm_linear.4
$region0: #{lrpm_linear.4}
  #allocation0 [shape = 'u32[]', space=smem, size = 0x4, offset = 0x4, fixed_abs, tag = 'smem constant byte address 0x4 - core index']
  #allocation1 [shape = 'u32[144,128]{1,0:T(1,128)}', space=vmem, size = 0x12000, scoped, tag = 'internal scratch']
  %s0 = inlined_call_operand.vmem [shape: f32[16,128], index: 0, kind: input, shape index: {}]
  %s1 = inlined_call_operand.vmem [shape: bf16[16,128], index: 1, kind: output, shape index: {0}]
  %s2 = inlined_call_operand.vmem [shape: bf16[16,128], index: 2, kind: output, shape index: {1}]
  %3 = xla_tuple %s1, %s2
  %s4 = sld [smem:[#allocation0]]
  $region22: #{lrpm_linear.4} parent=0
    _
  %s6 = ssub.s32 1, %s4
  %s7 = scalar_select 0, %s6, %s4
  // Predicated region
  $region2: #{lrpm_linear.4} parent=0 // pred_check
    _
  $region3: #{lrpm_linear.4} parent=0 // pred_check_branch
    %9 = sbr.rel (0) target = $region5
  $region4: #{lrpm_linear.4} parent=0 // pred_region
    _
  $region5: #{lrpm_linear.4} parent=0 // pred_fallthru
    _
  %v10 = vld [vmem:[%s0] sm:$0xff]
  %v11 = vld [vmem:[%s0 + $0x8] sm:$0xff]
  %v12 = vpack.c.bf16 %v11, %v10
  %v14 = vunpack.c.l.b16 %v12
  %v15 = vunpack.c.h.b16 %v12
  %v16 = vpack.c.b16 %v14, %v14
  %v17 = vpack.c.b16 %v15, %v15
  %20 = vst [vmem:[%s1] sm:$0xf] %v16
  %21 = vst [vmem:[%s1 + $0x4] sm:$0xf] %v17
  %v22 = vmul.f32 %v10, %v10
  %v23 = vmul.f32 %v11, %v11
  %v24 = vpack.c.bf16 %v23, %v22
  %v26 = vunpack.c.l.b16 %v24
  %v27 = vunpack.c.h.b16 %v24
  %v28 = vpack.c.b16 %v26, %v26
  %v29 = vpack.c.b16 %v27, %v27
  %32 = vst [vmem:[%s2] sm:$0xf] %v28
  %33 = vst [vmem:[%s2 + $0x4] sm:$0xf] %v29
  // Predicated region
  $region6: #{lrpm_linear.4} parent=0 // pred_check
    _
  $region7: #{lrpm_linear.4} parent=0 // pred_check_branch
    %35 = sbr.rel (0) target = $region9
  $region8: #{lrpm_linear.4} parent=0 // pred_region
    _
  $region9: #{lrpm_linear.4} parent=0 // pred_fallthru
    _
  // Predicated region
  $region10: #{lrpm_linear.4} parent=0 // pred_check
    _
  $region11: #{lrpm_linear.4} parent=0 // pred_check_branch
    %37 = sbr.rel (0) target = $region13
  $region12: #{lrpm_linear.4} parent=0 // pred_region
    _
  $region13: #{lrpm_linear.4} parent=0 // pred_fallthru
    _
  // Predicated region
  $region14: #{lrpm_linear.4} parent=0 // pred_check
    _
  $region15: #{lrpm_linear.4} parent=0 // pred_check_branch
    %39 = sbr.rel (0) target = $region17
  $region16: #{lrpm_linear.4} parent=0 // pred_region
    _
  $region17: #{lrpm_linear.4} parent=0 // pred_fallthru
    _
  // Predicated region
  $region18: #{lrpm_linear.4} parent=0 // pred_check
    _
  $region19: #{lrpm_linear.4} parent=0 // pred_check_branch
    %41 = sbr.rel (0) target = $region21
  $region20: #{lrpm_linear.4} parent=0 // pred_region
    _
  $region21: #{lrpm_linear.4} parent=0 // pred_fallthru
    _

// kernel: lrpm_linear.3
$region0: #{lrpm_linear.3}
  #allocation0 [shape = 'u32[]', space=smem, size = 0x4, offset = 0x4, fixed_abs, tag = 'smem constant byte address 0x4 - core index']
  #allocation1 [shape = 'u32[144,128]{1,0:T(1,128)}', space=vmem, size = 0x12000, scoped, tag = 'internal scratch']
  %s0 = inlined_call_operand.vmem [shape: f32[128,128], index: 0, kind: input, shape index: {}]
  %s1 = inlined_call_operand.vmem [shape: bf16[128,128], index: 1, kind: output, shape index: {}]
  %s2 = sld [smem:[#allocation0]]
  $region14: #{lrpm_linear.3} parent=0
    _
  %s4 = ssub.s32 1, %s2
  %s5 = scalar_select 0, %s4, %s2
  // Predicated region
  $region2: #{lrpm_linear.3} parent=0 // pred_check
    _
  $region3: #{lrpm_linear.3} parent=0 // pred_check_branch
    %7 = sbr.rel (0) target = $region5
  $region4: #{lrpm_linear.3} parent=0 // pred_region
    _
  $region5: #{lrpm_linear.3} parent=0 // pred_fallthru
    _
  %v8 = vld [vmem:[%s0] sm:$0xff]
  %v9 = vld [vmem:[%s0 + $0x8] sm:$0xff]
  %v10 = vld [vmem:[%s0 + $0x10] sm:$0xff]
  %v11 = vld [vmem:[%s0 + $0x18] sm:$0xff]
  %v12 = vld [vmem:[%s0 + $0x20] sm:$0xff]
  %v13 = vld [vmem:[%s0 + $0x28] sm:$0xff]
  %v14 = vld [vmem:[%s0 + $0x30] sm:$0xff]
  %v15 = vld [vmem:[%s0 + $0x38] sm:$0xff]
  %v16 = vld [vmem:[%s0 + $0x40] sm:$0xff]
  %v17 = vld [vmem:[%s0 + $0x48] sm:$0xff]
  %v18 = vld [vmem:[%s0 + $0x50] sm:$0xff]
  %v19 = vld [vmem:[%s0 + $0x58] sm:$0xff]
  %v20 = vld [vmem:[%s0 + $0x60] sm:$0xff]
  %v21 = vld [vmem:[%s0 + $0x68] sm:$0xff]
  %v22 = vld [vmem:[%s0 + $0x70] sm:$0xff]
  %v23 = vld [vmem:[%s0 + $0x78] sm:$0xff]
  %v24 = vmax.f32 %v8, 0.0
  %v25 = vmax.f32 %v9, 0.0
  %v26 = vmax.f32 %v10, 0.0
  %v27 = vmax.f32 %v11, 0.0
  %v28 = vmax.f32 %v12, 0.0
  %v29 = vmax.f32 %v13, 0.0
  %v30 = vmax.f32 %v14, 0.0
  %v31 = vmax.f32 %v15, 0.0
  %v32 = vmax.f32 %v16, 0.0
  %v33 = vmax.f32 %v17, 0.0
  %v34 = vmax.f32 %v18, 0.0
  %v35 = vmax.f32 %v19, 0.0
  %v36 = vmax.f32 %v20, 0.0
  %v37 = vmax.f32 %v21, 0.0
  %v38 = vmax.f32 %v22, 0.0
  %v39 = vmax.f32 %v23, 0.0
  %v40 = vand.u32 2147483647, %v8
  %v41 = vand.u32 2147483647, %v9
  %v42 = vand.u32 2147483647, %v10
  %v43 = vand.u32 2147483647, %v11
  %v44 = vand.u32 2147483647, %v12
  %v45 = vand.u32 2147483647, %v13
  %v46 = vand.u32 2147483647, %v14
  %v47 = vand.u32 2147483647, %v15
  %v48 = vand.u32 2147483647, %v16
  %v49 = vand.u32 2147483647, %v17
  %v50 = vand.u32 2147483647, %v18
  %v51 = vand.u32 2147483647, %v19
  %v52 = vand.u32 2147483647, %v20
  %v53 = vand.u32 2147483647, %v21
  %v54 = vand.u32 2147483647, %v22
  %v55 = vand.u32 2147483647, %v23
  %v56 = vsub.f32 0.0, %v40
  %v57 = vsub.f32 0.0, %v41
  %v58 = vsub.f32 0.0, %v42
  %v59 = vsub.f32 0.0, %v43
  %v60 = vsub.f32 0.0, %v44
  %v61 = vsub.f32 0.0, %v45
  %v62 = vsub.f32 0.0, %v46
  %v63 = vsub.f32 0.0, %v47
  %v64 = vsub.f32 0.0, %v48
  %v65 = vsub.f32 0.0, %v49
  %v66 = vsub.f32 0.0, %v50
  %v67 = vsub.f32 0.0, %v51
  %v68 = vsub.f32 0.0, %v52
  %v69 = vsub.f32 0.0, %v53
  %v70 = vsub.f32 0.0, %v54
  %v71 = vsub.f32 0.0, %v55
  %v72 = vmul.f32 %v56, 1.442695
  %v73 = vpow.pop %v72
  %v74 = vmul.f32 %v57, 1.442695
  %v75 = vpow.pop %v74
  %v76 = vmul.f32 %v58, 1.442695
  %v77 = vpow.pop %v76
  %v78 = vmul.f32 %v59, 1.442695
  %v79 = vpow.pop %v78
  %v80 = vmul.f32 %v60, 1.442695
  %v81 = vpow.pop %v80
  %v82 = vmul.f32 %v61, 1.442695
  %v83 = vpow.pop %v82
  %v84 = vmul.f32 %v62, 1.442695
  %v85 = vpow.pop %v84
  %v86 = vmul.f32 %v63, 1.442695
  %v87 = vpow.pop %v86
  %v88 = vmul.f32 %v64, 1.442695
  %v89 = vpow.pop %v88
  %v90 = vmul.f32 %v65, 1.442695
  %v91 = vpow.pop %v90
  %v92 = vmul.f32 %v66, 1.442695
  %v93 = vpow.pop %v92
  %v94 = vmul.f32 %v67, 1.442695
  %v95 = vpow.pop %v94
  %v96 = vmul.f32 %v68, 1.442695
  %v97 = vpow.pop %v96
  %v98 = vmul.f32 %v69, 1.442695
  %v99 = vpow.pop %v98
  %v100 = vmul.f32 %v70, 1.442695
  %v101 = vpow.pop %v100
  %v102 = vmul.f32 %v71, 1.442695
  %v103 = vpow.pop %v102
  %v104 = vadd.f32 %v73, 1.0
  %v105 = vlog2.pop %v104
  %v106 = vmul.f32 %v105, 0.6931472
  %v107 = vmul.f32 -0.5, %v73
  %v108 = vadd.f32 %v107, 1.0
  %v109 = vmul.f32 %v108, %v73
  %v110 = vand.u32 2147483647, %v73
  %vm111 = vcmp.lt.f32.partialorder %v110, 0.0004427343
  %v112 = vsel %vm111, %v109, %v106
  %v113 = vadd.f32 %v75, 1.0
  %v114 = vlog2.pop %v113
  %v115 = vmul.f32 %v114, 0.6931472
  %v116 = vmul.f32 -0.5, %v75
  %v117 = vadd.f32 %v116, 1.0
  %v118 = vmul.f32 %v117, %v75
  %v119 = vand.u32 2147483647, %v75
  %vm120 = vcmp.lt.f32.partialorder %v119, 0.0004427343
  %v121 = vsel %vm120, %v118, %v115
  %v122 = vadd.f32 %v77, 1.0
  %v123 = vlog2.pop %v122
  %v124 = vmul.f32 %v123, 0.6931472
  %v125 = vmul.f32 -0.5, %v77
  %v126 = vadd.f32 %v125, 1.0
  %v127 = vmul.f32 %v126, %v77
  %v128 = vand.u32 2147483647, %v77
  %vm129 = vcmp.lt.f32.partialorder %v128, 0.0004427343
  %v130 = vsel %vm129, %v127, %v124
  %v131 = vadd.f32 %v79, 1.0
  %v132 = vlog2.pop %v131
  %v133 = vmul.f32 %v132, 0.6931472
  %v134 = vmul.f32 -0.5, %v79
  %v135 = vadd.f32 %v134, 1.0
  %v136 = vmul.f32 %v135, %v79
  %v137 = vand.u32 2147483647, %v79
  %vm138 = vcmp.lt.f32.partialorder %v137, 0.0004427343
  %v139 = vsel %vm138, %v136, %v133
  %v140 = vadd.f32 %v81, 1.0
  %v141 = vlog2.pop %v140
  %v142 = vmul.f32 %v141, 0.6931472
  %v143 = vmul.f32 -0.5, %v81
  %v144 = vadd.f32 %v143, 1.0
  %v145 = vmul.f32 %v144, %v81
  %v146 = vand.u32 2147483647, %v81
  %vm147 = vcmp.lt.f32.partialorder %v146, 0.0004427343
  %v148 = vsel %vm147, %v145, %v142
  %v149 = vadd.f32 %v83, 1.0
  %v150 = vlog2.pop %v149
  %v151 = vmul.f32 %v150, 0.6931472
  %v152 = vmul.f32 -0.5, %v83
  %v153 = vadd.f32 %v152, 1.0
  %v154 = vmul.f32 %v153, %v83
  %v155 = vand.u32 2147483647, %v83
  %vm156 = vcmp.lt.f32.partialorder %v155, 0.0004427343
  %v157 = vsel %vm156, %v154, %v151
  %v158 = vadd.f32 %v85, 1.0
  %v159 = vlog2.pop %v158
  %v160 = vmul.f32 %v159, 0.6931472
  %v161 = vmul.f32 -0.5, %v85
  %v162 = vadd.f32 %v161, 1.0
  %v163 = vmul.f32 %v162, %v85
  %v164 = vand.u32 2147483647, %v85
  %vm165 = vcmp.lt.f32.partialorder %v164, 0.0004427343
  %v166 = vsel %vm165, %v163, %v160
  %v167 = vadd.f32 %v87, 1.0
  %v168 = vlog2.pop %v167
  %v169 = vmul.f32 %v168, 0.6931472
  %v170 = vmul.f32 -0.5, %v87
  %v171 = vadd.f32 %v170, 1.0
  %v172 = vmul.f32 %v171, %v87
  %v173 = vand.u32 2147483647, %v87
  %vm174 = vcmp.lt.f32.partialorder %v173, 0.0004427343
  %v175 = vsel %vm174, %v172, %v169
  %v176 = vadd.f32 %v89, 1.0
  %v177 = vlog2.pop %v176
  %v178 = vmul.f32 %v177, 0.6931472
  %v179 = vmul.f32 -0.5, %v89
  %v180 = vadd.f32 %v179, 1.0
  %v181 = vmul.f32 %v180, %v89
  %v182 = vand.u32 2147483647, %v89
  %vm183 = vcmp.lt.f32.partialorder %v182, 0.0004427343
  %v184 = vsel %vm183, %v181, %v178
  %v185 = vadd.f32 %v91, 1.0
  %v186 = vlog2.pop %v185
  %v187 = vmul.f32 %v186, 0.6931472
  %v188 = vmul.f32 -0.5, %v91
  %v189 = vadd.f32 %v188, 1.0
  %v190 = vmul.f32 %v189, %v91
  %v191 = vand.u32 2147483647, %v91
  %vm192 = vcmp.lt.f32.partialorder %v191, 0.0004427343
  %v193 = vsel %vm192, %v190, %v187
  %v194 = vadd.f32 %v93, 1.0
  %v195 = vlog2.pop %v194
  %v196 = vmul.f32 %v195, 0.6931472
  %v197 = vmul.f32 -0.5, %v93
  %v198 = vadd.f32 %v197, 1.0
  %v199 = vmul.f32 %v198, %v93
  %v200 = vand.u32 2147483647, %v93
  %vm201 = vcmp.lt.f32.partialorder %v200, 0.0004427343
  %v202 = vsel %vm201, %v199, %v196
  %v203 = vadd.f32 %v95, 1.0
  %v204 = vlog2.pop %v203
  %v205 = vmul.f32 %v204, 0.6931472
  %v206 = vmul.f32 -0.5, %v95
  %v207 = vadd.f32 %v206, 1.0
  %v208 = vmul.f32 %v207, %v95
  %v209 = vand.u32 2147483647, %v95
  %vm210 = vcmp.lt.f32.partialorder %v209, 0.0004427343
  %v211 = vsel %vm210, %v208, %v205
  %v212 = vadd.f32 %v97, 1.0
  %v213 = vlog2.pop %v212
  %v214 = vmul.f32 %v213, 0.6931472
  %v215 = vmul.f32 -0.5, %v97
  %v216 = vadd.f32 %v215, 1.0
  %v217 = vmul.f32 %v216, %v97
  %v218 = vand.u32 2147483647, %v97
  %vm219 = vcmp.lt.f32.partialorder %v218, 0.0004427343
  %v220 = vsel %vm219, %v217, %v214
  %v221 = vadd.f32 %v99, 1.0
  %v222 = vlog2.pop %v221
  %v223 = vmul.f32 %v222, 0.6931472
  %v224 = vmul.f32 -0.5, %v99
  %v225 = vadd.f32 %v224, 1.0
  %v226 = vmul.f32 %v225, %v99
  %v227 = vand.u32 2147483647, %v99
  %vm228 = vcmp.lt.f32.partialorder %v227, 0.0004427343
  %v229 = vsel %vm228, %v226, %v223
  %v230 = vadd.f32 %v101, 1.0
  %v231 = vlog2.pop %v230
  %v232 = vmul.f32 %v231, 0.6931472
  %v233 = vmul.f32 -0.5, %v101
  %v234 = vadd.f32 %v233, 1.0
  %v235 = vmul.f32 %v234, %v101
  %v236 = vand.u32 2147483647, %v101
  %vm237 = vcmp.lt.f32.partialorder %v236, 0.0004427343
  %v238 = vsel %vm237, %v235, %v232
  %v239 = vadd.f32 %v103, 1.0
  %v240 = vlog2.pop %v239
  %v241 = vmul.f32 %v240, 0.6931472
  %v242 = vmul.f32 -0.5, %v103
  %v243 = vadd.f32 %v242, 1.0
  %v244 = vmul.f32 %v243, %v103
  %v245 = vand.u32 2147483647, %v103
  %vm246 = vcmp.lt.f32.partialorder %v245, 0.0004427343
  %v247 = vsel %vm246, %v244, %v241
  %v248 = vadd.f32 %v24, %v112
  %v249 = vadd.f32 %v25, %v121
  %v250 = vadd.f32 %v26, %v130
  %v251 = vadd.f32 %v27, %v139
  %v252 = vadd.f32 %v28, %v148
  %v253 = vadd.f32 %v29, %v157
  %v254 = vadd.f32 %v30, %v166
  %v255 = vadd.f32 %v31, %v175
  %v256 = vadd.f32 %v32, %v184
  %v257 = vadd.f32 %v33, %v193
  %v258 = vadd.f32 %v34, %v202
  %v259 = vadd.f32 %v35, %v211
  %v260 = vadd.f32 %v36, %v220
  %v261 = vadd.f32 %v37, %v229
  %v262 = vadd.f32 %v38, %v238
  %v263 = vadd.f32 %v39, %v247
  %v264 = vmul.f32 %v248, %v248
  %v265 = vmul.f32 %v249, %v249
  %v266 = vmul.f32 %v250, %v250
  %v267 = vmul.f32 %v251, %v251
  %v268 = vmul.f32 %v252, %v252
  %v269 = vmul.f32 %v253, %v253
  %v270 = vmul.f32 %v254, %v254
  %v271 = vmul.f32 %v255, %v255
  %v272 = vmul.f32 %v256, %v256
  %v273 = vmul.f32 %v257, %v257
  %v274 = vmul.f32 %v258, %v258
  %v275 = vmul.f32 %v259, %v259
  %v276 = vmul.f32 %v260, %v260
  %v277 = vmul.f32 %v261, %v261
  %v278 = vmul.f32 %v262, %v262
  %v279 = vmul.f32 %v263, %v263
  %s280 = smul.u32 0, 128
  %v281 = vlaneseq
  %v282 = vshrl.u32 %v281, 7
  %v283 = vadd.s32 %v282, 8
  %v284 = vadd.s32 %v282, 16
  %v285 = vadd.s32 %v282, 24
  %v286 = vadd.s32 %v282, 32
  %v287 = vadd.s32 %v282, 40
  %v288 = vadd.s32 %v282, 48
  %v289 = vadd.s32 %v282, 56
  %v290 = vadd.s32 %v282, 64
  %v291 = vadd.s32 %v282, 72
  %v292 = vadd.s32 %v282, 80
  %v293 = vadd.s32 %v282, 88
  %v294 = vadd.s32 %v282, 96
  %v295 = vadd.s32 %v282, 104
  %v296 = vadd.s32 %v282, 112
  %v297 = vadd.s32 %v282, 120
  %v298 = vstv %s280
  %v299 = vadd.s32 %v298, %v282
  %v300 = vadd.s32 %v298, %v283
  %v301 = vadd.s32 %v298, %v284
  %v302 = vadd.s32 %v298, %v285
  %v303 = vadd.s32 %v298, %v286
  %v304 = vadd.s32 %v298, %v287
  %v305 = vadd.s32 %v298, %v288
  %v306 = vadd.s32 %v298, %v289
  %v307 = vadd.s32 %v298, %v290
  %v308 = vadd.s32 %v298, %v291
  %v309 = vadd.s32 %v298, %v292
  %v310 = vadd.s32 %v298, %v293
  %v311 = vadd.s32 %v298, %v294
  %v312 = vadd.s32 %v298, %v295
  %v313 = vadd.s32 %v298, %v296
  %v314 = vadd.s32 %v298, %v297
  %vm315 = vcmp.lt.s32.totalorder %v299, 32
  %vm316 = vcmp.lt.s32.totalorder %v300, 32
  %vm317 = vcmp.lt.s32.totalorder %v301, 32
  %vm318 = vcmp.lt.s32.totalorder %v302, 32
  %vm319 = vcmp.lt.s32.totalorder %v303, 32
  %vm320 = vcmp.lt.s32.totalorder %v304, 32
  %vm321 = vcmp.lt.s32.totalorder %v305, 32
  %vm322 = vcmp.lt.s32.totalorder %v306, 32
  %vm323 = vcmp.lt.s32.totalorder %v307, 32
  %vm324 = vcmp.lt.s32.totalorder %v308, 32
  %vm325 = vcmp.lt.s32.totalorder %v309, 32
  %vm326 = vcmp.lt.s32.totalorder %v310, 32
  %vm327 = vcmp.lt.s32.totalorder %v311, 32
  %vm328 = vcmp.lt.s32.totalorder %v312, 32
  %vm329 = vcmp.lt.s32.totalorder %v313, 32
  %vm330 = vcmp.lt.s32.totalorder %v314, 32
  %v331 = vsel %vm315, %v264, 0.0
  %v332 = vsel %vm316, %v265, 0.0
  %v333 = vsel %vm317, %v266, 0.0
  %v334 = vsel %vm318, %v267, 0.0
  %v335 = vsel %vm319, %v268, 0.0
  %v336 = vsel %vm320, %v269, 0.0
  %v337 = vsel %vm321, %v270, 0.0
  %v338 = vsel %vm322, %v271, 0.0
  %v339 = vsel %vm323, %v272, 0.0
  %v340 = vsel %vm324, %v273, 0.0
  %v341 = vsel %vm325, %v274, 0.0
  %v342 = vsel %vm326, %v275, 0.0
  %v343 = vsel %vm327, %v276, 0.0
  %v344 = vsel %vm328, %v277, 0.0
  %v345 = vsel %vm329, %v278, 0.0
  %v346 = vsel %vm330, %v279, 0.0
  %v347 = vpack.c.bf16 %v332, %v331
  %v348 = vpack.c.bf16 %v334, %v333
  %v349 = vpack.c.bf16 %v336, %v335
  %v350 = vpack.c.bf16 %v338, %v337
  %v351 = vpack.c.bf16 %v340, %v339
  %v352 = vpack.c.bf16 %v342, %v341
  %v353 = vpack.c.bf16 %v344, %v343
  %v354 = vpack.c.bf16 %v346, %v345
  %v363 = vunpack.c.l.b16 %v347
  %v364 = vunpack.c.h.b16 %v347
  %v365 = vunpack.c.l.b16 %v348
  %v366 = vunpack.c.h.b16 %v348
  %v367 = vunpack.c.l.b16 %v349
  %v368 = vunpack.c.h.b16 %v349
  %v369 = vunpack.c.l.b16 %v350
  %v370 = vunpack.c.h.b16 %v350
  %v371 = vunpack.c.l.b16 %v351
  %v372 = vunpack.c.h.b16 %v351
  %v373 = vunpack.c.l.b16 %v352
  %v374 = vunpack.c.h.b16 %v352
  %v375 = vunpack.c.l.b16 %v353
  %v376 = vunpack.c.h.b16 %v353
  %v377 = vunpack.c.l.b16 %v354
  %v378 = vunpack.c.h.b16 %v354
  %v379 = vpack.c.b16 %v363, %v363
  %v380 = vpack.c.b16 %v364, %v364
  %v381 = vpack.c.b16 %v365, %v365
  %v382 = vpack.c.b16 %v366, %v366
  %v383 = vpack.c.b16 %v367, %v367
  %v384 = vpack.c.b16 %v368, %v368
  %v385 = vpack.c.b16 %v369, %v369
  %v386 = vpack.c.b16 %v370, %v370
  %v387 = vpack.c.b16 %v371, %v371
  %v388 = vpack.c.b16 %v372, %v372
  %v389 = vpack.c.b16 %v373, %v373
  %v390 = vpack.c.b16 %v374, %v374
  %v391 = vpack.c.b16 %v375, %v375
  %v392 = vpack.c.b16 %v376, %v376
  %v393 = vpack.c.b16 %v377, %v377
  %v394 = vpack.c.b16 %v378, %v378
  %411 = vst [vmem:[%s1] sm:$0xf] %v379
  %412 = vst [vmem:[%s1 + $0x4] sm:$0xf] %v380
  %413 = vst [vmem:[%s1 + $0x8] sm:$0xf] %v381
  %414 = vst [vmem:[%s1 + $0xc] sm:$0xf] %v382
  %415 = vst [vmem:[%s1 + $0x10] sm:$0xf] %v383
  %416 = vst [vmem:[%s1 + $0x14] sm:$0xf] %v384
  %417 = vst [vmem:[%s1 + $0x18] sm:$0xf] %v385
  %418 = vst [vmem:[%s1 + $0x1c] sm:$0xf] %v386
  %419 = vst [vmem:[%s1 + $0x20] sm:$0xf] %v387
  %420 = vst [vmem:[%s1 + $0x24] sm:$0xf] %v388
  %421 = vst [vmem:[%s1 + $0x28] sm:$0xf] %v389
  %422 = vst [vmem:[%s1 + $0x2c] sm:$0xf] %v390
  %423 = vst [vmem:[%s1 + $0x30] sm:$0xf] %v391
  %424 = vst [vmem:[%s1 + $0x34] sm:$0xf] %v392
  %425 = vst [vmem:[%s1 + $0x38] sm:$0xf] %v393
  %426 = vst [vmem:[%s1 + $0x3c] sm:$0xf] %v394
  // Predicated region
  $region6: #{lrpm_linear.3} parent=0 // pred_check
    _
  $region7: #{lrpm_linear.3} parent=0 // pred_check_branch
    %428 = sbr.rel (0) target = $region9
  $region8: #{lrpm_linear.3} parent=0 // pred_region
    _
  $region9: #{lrpm_linear.3} parent=0 // pred_fallthru
    _
  // Predicated region
  $region10: #{lrpm_linear.3} parent=0 // pred_check
    _
  $region11: #{lrpm_linear.3} parent=0 // pred_check_branch
    %430 = sbr.rel (0) target = $region13
  $region12: #{lrpm_linear.3} parent=0 // pred_region
    _
  $region13: #{lrpm_linear.3} parent=0 // pred_fallthru
    _

// kernel: lrpm_linear.5
$region0: #{lrpm_linear.5}
  #allocation0 [shape = 'u32[]', space=smem, size = 0x4, offset = 0x4, fixed_abs, tag = 'smem constant byte address 0x4 - core index']
  #allocation1 [shape = 'u32[144,128]{1,0:T(1,128)}', space=vmem, size = 0x12000, scoped, tag = 'internal scratch']
  #allocation2 [shape = 'f32[16,128]{1,0:T(8,128)}', space=vmem, size = 0x2000, scoped, tag = 'scratch operand']
  #allocation3 [shape = 'f32[16,128]{1,0:T(8,128)}', space=vmem, size = 0x2000, scoped, tag = 'scratch operand']
  %s0 = inlined_call_operand.vmem [shape: bf16[16,128], index: 0, kind: input, shape index: {}]
  %s1 = inlined_call_operand.vmem [shape: bf16[16,128], index: 1, kind: input, shape index: {}]
  %s2 = inlined_call_operand.vmem [shape: bf16[128,128], index: 2, kind: input, shape index: {}]
  %s3 = inlined_call_operand.vmem [shape: bf16[128,128], index: 3, kind: input, shape index: {}]
  %s4 = inlined_call_operand.vmem [shape: bf16[16,128], index: 4, kind: input, shape index: {}]
  %s5 = inlined_call_operand.vmem [shape: f32[16,128], index: 5, kind: output, shape index: {}]
  %s6 = sld [smem:[#allocation0]]
  $region38: #{lrpm_linear.5} parent=0
    _
  %s8 = ssub.s32 1, %s6
  %s9 = scalar_select 0, %s8, %s6
  // Predicated region
  $region2: #{lrpm_linear.5} parent=0 // pred_check
    _
  $region3: #{lrpm_linear.5} parent=0 // pred_check_branch
    %11 = sbr.rel (0) target = $region5
  $region4: #{lrpm_linear.5} parent=0 // pred_region
    _
  $region5: #{lrpm_linear.5} parent=0 // pred_fallthru
    _
  // Predicated region
  $region6: #{lrpm_linear.5} parent=0 // pred_check
    _
  $region7: #{lrpm_linear.5} parent=0 // pred_check_branch
    %13 = sbr.rel (0) target = $region9
  $region8: #{lrpm_linear.5} parent=0 // pred_region
    _
  $region9: #{lrpm_linear.5} parent=0 // pred_fallthru
    _
  // Predicated region
  $region10: #{lrpm_linear.5} parent=0 // pred_check
    _
  $region11: #{lrpm_linear.5} parent=0 // pred_check_branch
    %15 = sbr.rel (0) target = $region13
  $region12: #{lrpm_linear.5} parent=0 // pred_region
    _
  $region13: #{lrpm_linear.5} parent=0 // pred_fallthru
    _
  // Predicated region
  $region14: #{lrpm_linear.5} parent=0 // pred_check
    _
  $region15: #{lrpm_linear.5} parent=0 // pred_check_branch
    %17 = sbr.rel (0) target = $region17
  $region16: #{lrpm_linear.5} parent=0 // pred_region
    _
  $region17: #{lrpm_linear.5} parent=0 // pred_fallthru
    _
  // Predicated region
  $region18: #{lrpm_linear.5} parent=0 // pred_check
    _
  $region19: #{lrpm_linear.5} parent=0 // pred_check_branch
    %19 = sbr.rel (0) target = $region21
  $region20: #{lrpm_linear.5} parent=0 // pred_region
    _
  $region21: #{lrpm_linear.5} parent=0 // pred_fallthru
    _
  %p21 = scmp.eq.s32.totalorder 0, 0
  // Predicated region
  $region22: #{lrpm_linear.5} parent=0 // pred_check
    %p22 = pneg %p21
  $region23: #{lrpm_linear.5} parent=0 // pred_check_branch
    %24 = sbr.rel (%p22) target = $region25
  $region24: #{lrpm_linear.5} parent=0 // pred_region
    %25 = vst [vmem:[#allocation2] sm:$0xff] 0.0
    %26 = vst [vmem:[#allocation2 + $0x8] sm:$0xff] 0.0
    %27 = vst [vmem:[#allocation3] sm:$0xff] 0.0
    %28 = vst [vmem:[#allocation3 + $0x8] sm:$0xff] 0.0
  $region25: #{lrpm_linear.5} parent=0 // pred_fallthru
    _
  %v29 = vld [vmem:[#allocation2] sm:$0xff]
  %v30 = vld [vmem:[#allocation2 + $0x8] sm:$0xff]
  %v31 = vld [vmem:[%s0] sm:$0xf]
  %v32 = vld [vmem:[%s0 + $0x4] sm:$0xf]
  %v33 = vld [vmem:[%s2] sm:$0xf]
  %v34 = vld [vmem:[%s2 + $0x4] sm:$0xf]
  %v35 = vld [vmem:[%s2 + $0x8] sm:$0xf]
  %v36 = vld [vmem:[%s2 + $0xc] sm:$0xf]
  %v37 = vld [vmem:[%s2 + $0x10] sm:$0xf]
  %v38 = vld [vmem:[%s2 + $0x14] sm:$0xf]
  %v39 = vld [vmem:[%s2 + $0x18] sm:$0xf]
  %v40 = vld [vmem:[%s2 + $0x1c] sm:$0xf]
  %v41 = vld [vmem:[%s2 + $0x20] sm:$0xf]
  %v42 = vld [vmem:[%s2 + $0x24] sm:$0xf]
  %v43 = vld [vmem:[%s2 + $0x28] sm:$0xf]
  %v44 = vld [vmem:[%s2 + $0x2c] sm:$0xf]
  %v45 = vld [vmem:[%s2 + $0x30] sm:$0xf]
  %v46 = vld [vmem:[%s2 + $0x34] sm:$0xf]
  %v47 = vld [vmem:[%s2 + $0x38] sm:$0xf]
  %v48 = vld [vmem:[%s2 + $0x3c] sm:$0xf]
  %v51 = vunpack.c.l.b16 %v31
  %v52 = vunpack.c.l.b16 %v32
  %v53 = vpack.c.b16 %v52, %v51
  %v71 = vunpack.c.l.b16 %v33
  %v72 = vunpack.c.l.b16 %v34
  %v73 = vunpack.c.l.b16 %v35
  %v74 = vunpack.c.l.b16 %v36
  %v75 = vunpack.c.l.b16 %v37
  %v76 = vunpack.c.l.b16 %v38
  %v77 = vunpack.c.l.b16 %v39
  %v78 = vunpack.c.l.b16 %v40
  %v79 = vunpack.c.l.b16 %v41
  %v80 = vunpack.c.l.b16 %v42
  %v81 = vunpack.c.l.b16 %v43
  %v82 = vunpack.c.l.b16 %v44
  %v83 = vunpack.c.l.b16 %v45
  %v84 = vunpack.c.l.b16 %v46
  %v85 = vunpack.c.l.b16 %v47
  %v86 = vunpack.c.l.b16 %v48
  %v87 = vpack.c.b16 %v72, %v71
  %v88 = vpack.c.b16 %v74, %v73
  %v89 = vpack.c.b16 %v76, %v75
  %v90 = vpack.c.b16 %v78, %v77
  %v91 = vpack.c.b16 %v80, %v79
  %v92 = vpack.c.b16 %v82, %v81
  %v93 = vpack.c.b16 %v84, %v83
  %v94 = vpack.c.b16 %v86, %v85
  %103 = vmatprep.subr.bf16.mxu0 0
  %104 = vmatpush1.bf16.msra.mxu0 %v87
  %105 = vmatprep.subr.bf16.mxu0 0
  %106 = vmatpush1.bf16.msra.mxu0 %v88
  %107 = vmatprep.subr.bf16.mxu0 0
  %108 = vmatpush1.bf16.msra.mxu0 %v89
  %109 = vmatprep.subr.bf16.mxu0 0
  %110 = vmatpush1.bf16.msra.mxu0 %v90
  %111 = vmatprep.subr.bf16.mxu0 0
  %112 = vmatpush1.bf16.msra.mxu0 %v91
  %113 = vmatprep.subr.bf16.mxu0 0
  %114 = vmatpush1.bf16.msra.mxu0 %v92
  %115 = vmatprep.subr.bf16.mxu0 0
  %116 = vmatpush1.bf16.msra.mxu0 %v93
  %117 = vmatprep.subr.bf16.mxu0 0
  %118 = vmatpush1.bf16.msra.mxu0 %v94
  %119 = vmatprep.subr.bf16.mxu0 0
  %120 = vmatpush1.bf16.msra.mxu0 0
  %121 = vmatprep.subr.bf16.mxu0 0
  %122 = vmatpush1.bf16.msra.mxu0 0
  %123 = vmatprep.subr.bf16.mxu0 0
  %124 = vmatpush1.bf16.msra.mxu0 0
  %125 = vmatprep.subr.bf16.mxu0 0
  %126 = vmatpush1.bf16.msra.mxu0 0
  %127 = vmatprep.subr.bf16.mxu0 0
  %128 = vmatpush1.bf16.msra.mxu0 0
  %129 = vmatprep.subr.bf16.mxu0 0
  %130 = vmatpush1.bf16.msra.mxu0 0
  %131 = vmatprep.subr.bf16.mxu0 0
  %132 = vmatpush1.bf16.msra.mxu0 0
  %133 = vmatprep.subr.bf16.mxu0 0
  %134 = vmatpush1.bf16.msra.mxu0 0
  %135 = vmatprep.mubr.bf16.mxu0 0
  %136 = vmatmul.mubr.bf16.gmra.mrb[0].mxu0 %v53
  %v137 = vpop.f32.mrb[0].mxu0
  %v138 = vadd.f32 0.0, %v137
  %v139 = vpop.f32.mrb[0].mxu0
  %v140 = vpop.f32.mrb[0].mxu0
  %v141 = vadd.f32 0.0, %v140
  %v142 = vpop.f32.mrb[0].mxu0
  %143 = vdwg.mxu0
  %v144 = vadd.f32 %v29, %v138
  %v145 = vadd.f32 %v30, %v141
  %146 = vst [vmem:[#allocation2] sm:$0xff] %v144
  %147 = vst [vmem:[#allocation2 + $0x8] sm:$0xff] %v145
  %v148 = vld [vmem:[#allocation3] sm:$0xff]
  %v149 = vld [vmem:[#allocation3 + $0x8] sm:$0xff]
  %v150 = vld [vmem:[%s1] sm:$0xf]
  %v151 = vld [vmem:[%s1 + $0x4] sm:$0xf]
  %v152 = vld [vmem:[%s3] sm:$0xf]
  %v153 = vld [vmem:[%s3 + $0x4] sm:$0xf]
  %v154 = vld [vmem:[%s3 + $0x8] sm:$0xf]
  %v155 = vld [vmem:[%s3 + $0xc] sm:$0xf]
  %v156 = vld [vmem:[%s3 + $0x10] sm:$0xf]
  %v157 = vld [vmem:[%s3 + $0x14] sm:$0xf]
  %v158 = vld [vmem:[%s3 + $0x18] sm:$0xf]
  %v159 = vld [vmem:[%s3 + $0x1c] sm:$0xf]
  %v160 = vld [vmem:[%s3 + $0x20] sm:$0xf]
  %v161 = vld [vmem:[%s3 + $0x24] sm:$0xf]
  %v162 = vld [vmem:[%s3 + $0x28] sm:$0xf]
  %v163 = vld [vmem:[%s3 + $0x2c] sm:$0xf]
  %v164 = vld [vmem:[%s3 + $0x30] sm:$0xf]
  %v165 = vld [vmem:[%s3 + $0x34] sm:$0xf]
  %v166 = vld [vmem:[%s3 + $0x38] sm:$0xf]
  %v167 = vld [vmem:[%s3 + $0x3c] sm:$0xf]
  %v170 = vunpack.c.l.b16 %v150
  %v171 = vunpack.c.l.b16 %v151
  %v172 = vpack.c.b16 %v171, %v170
  %v190 = vunpack.c.l.b16 %v152
  %v191 = vunpack.c.l.b16 %v153
  %v192 = vunpack.c.l.b16 %v154
  %v193 = vunpack.c.l.b16 %v155
  %v194 = vunpack.c.l.b16 %v156
  %v195 = vunpack.c.l.b16 %v157
  %v196 = vunpack.c.l.b16 %v158
  %v197 = vunpack.c.l.b16 %v159
  %v198 = vunpack.c.l.b16 %v160
  %v199 = vunpack.c.l.b16 %v161
  %v200 = vunpack.c.l.b16 %v162
  %v201 = vunpack.c.l.b16 %v163
  %v202 = vunpack.c.l.b16 %v164
  %v203 = vunpack.c.l.b16 %v165
  %v204 = vunpack.c.l.b16 %v166
  %v205 = vunpack.c.l.b16 %v167
  %v206 = vpack.c.b16 %v191, %v190
  %v207 = vpack.c.b16 %v193, %v192
  %v208 = vpack.c.b16 %v195, %v194
  %v209 = vpack.c.b16 %v197, %v196
  %v210 = vpack.c.b16 %v199, %v198
  %v211 = vpack.c.b16 %v201, %v200
  %v212 = vpack.c.b16 %v203, %v202
  %v213 = vpack.c.b16 %v205, %v204
  %222 = vmatprep.subr.bf16.mxu0 0
  %223 = vmatpush1.bf16.msra.mxu0 %v206
  %224 = vmatprep.subr.bf16.mxu0 0
  %225 = vmatpush1.bf16.msra.mxu0 %v207
  %226 = vmatprep.subr.bf16.mxu0 0
  %227 = vmatpush1.bf16.msra.mxu0 %v208
  %228 = vmatprep.subr.bf16.mxu0 0
  %229 = vmatpush1.bf16.msra.mxu0 %v209
  %230 = vmatprep.subr.bf16.mxu0 0
  %231 = vmatpush1.bf16.msra.mxu0 %v210
  %232 = vmatprep.subr.bf16.mxu0 0
  %233 = vmatpush1.bf16.msra.mxu0 %v211
  %234 = vmatprep.subr.bf16.mxu0 0
  %235 = vmatpush1.bf16.msra.mxu0 %v212
  %236 = vmatprep.subr.bf16.mxu0 0
  %237 = vmatpush1.bf16.msra.mxu0 %v213
  %238 = vmatprep.subr.bf16.mxu0 0
  %239 = vmatpush1.bf16.msra.mxu0 0
  %240 = vmatprep.subr.bf16.mxu0 0
  %241 = vmatpush1.bf16.msra.mxu0 0
  %242 = vmatprep.subr.bf16.mxu0 0
  %243 = vmatpush1.bf16.msra.mxu0 0
  %244 = vmatprep.subr.bf16.mxu0 0
  %245 = vmatpush1.bf16.msra.mxu0 0
  %246 = vmatprep.subr.bf16.mxu0 0
  %247 = vmatpush1.bf16.msra.mxu0 0
  %248 = vmatprep.subr.bf16.mxu0 0
  %249 = vmatpush1.bf16.msra.mxu0 0
  %250 = vmatprep.subr.bf16.mxu0 0
  %251 = vmatpush1.bf16.msra.mxu0 0
  %252 = vmatprep.subr.bf16.mxu0 0
  %253 = vmatpush1.bf16.msra.mxu0 0
  %254 = vmatprep.mubr.bf16.mxu0 0
  %255 = vmatmul.mubr.bf16.gmra.mrb[0].mxu0 %v172
  %v256 = vpop.f32.mrb[0].mxu0
  %v257 = vadd.f32 0.0, %v256
  %v258 = vpop.f32.mrb[0].mxu0
  %v259 = vpop.f32.mrb[0].mxu0
  %v260 = vadd.f32 0.0, %v259
  %v261 = vpop.f32.mrb[0].mxu0
  %262 = vdwg.mxu0
  %v263 = vadd.f32 %v148, %v257
  %v264 = vadd.f32 %v149, %v260
  %265 = vst [vmem:[#allocation3] sm:$0xff] %v263
  %266 = vst [vmem:[#allocation3 + $0x8] sm:$0xff] %v264
  // Predicated region
  $region26: #{lrpm_linear.5} parent=0 // pred_check
    %p267 = pneg %p21
  $region27: #{lrpm_linear.5} parent=0 // pred_check_branch
    %269 = sbr.rel (%p267) target = $region29
  $region28: #{lrpm_linear.5} parent=0 // pred_region
    %v270 = vld [vmem:[%s4] sm:$0xf]
    %v271 = vld [vmem:[%s4 + $0x4] sm:$0xf]
    %v272 = vunpack.c.l.bf16 %v270
    %v273 = vunpack.c.l.bf16 %v271
    %v274 = vld [vmem:[#allocation2] sm:$0xff]
    %v275 = vld [vmem:[#allocation2 + $0x8] sm:$0xff]
    %v276 = vld [vmem:[#allocation3] sm:$0xff]
    %v277 = vld [vmem:[#allocation3 + $0x8] sm:$0xff]
    %v278 = vrsqrt.pop %v276
    %v279 = vmul.f32 %v276, %v278
    %vm280 = vcmp.eq.f32.partialorder %v276, inf
    %v281 = vsel %vm280, %v276, %v279
    %vm282 = vcmp.eq.f32.partialorder %v276, 0.0
    %v283 = vand.u32 %v276, 2147483648
    %v284 = vsel %vm282, %v283, %v281
    %v285 = vrsqrt.pop %v277
    %v286 = vmul.f32 %v277, %v285
    %vm287 = vcmp.eq.f32.partialorder %v277, inf
    %v288 = vsel %vm287, %v277, %v286
    %vm289 = vcmp.eq.f32.partialorder %v277, 0.0
    %v290 = vand.u32 %v277, 2147483648
    %v291 = vsel %vm289, %v290, %v288
    %v292 = vmul.f32 %v284, %v272
    %v293 = vmul.f32 %v291, %v273
    %v294 = vadd.f32 %v274, %v292
    %v295 = vadd.f32 %v275, %v293
    %296 = vst [vmem:[%s5] sm:$0xff] %v294
    %297 = vst [vmem:[%s5 + $0x8] sm:$0xff] %v295
  $region29: #{lrpm_linear.5} parent=0 // pred_fallthru
    _
  // Predicated region
  $region30: #{lrpm_linear.5} parent=0 // pred_check
    _
  $region31: #{lrpm_linear.5} parent=0 // pred_check_branch
    %299 = sbr.rel (0) target = $region33
  $region32: #{lrpm_linear.5} parent=0 // pred_region
    _
  $region33: #{lrpm_linear.5} parent=0 // pred_fallthru
    _
  // Predicated region
  $region34: #{lrpm_linear.5} parent=0 // pred_check
    _
  $region35: #{lrpm_linear.5} parent=0 // pred_check_branch
    %301 = sbr.rel (0) target = $region37
  $region36: #{lrpm_linear.5} parent=0 // pred_region
    _
  $region37: #{lrpm_linear.5} parent=0 // pred_fallthru
    _

</llo_original>
